<compile_context>
chip_gen: v6e
topology: v6e:2x2x1
jax: 0.10.0
libtpu: 0.0.40
codegen_flags: <defaults>
</compile_context>

<pallas_src>
import math

import jax
import jax.numpy as jnp
from jax import lax
from jax.experimental import pallas as pl
from jax.experimental.pallas import tpu as pltpu


# Contract last dim of x-tile (tm, tk) with last dim of w-tile (tn, tk) -> (tm, tn).
_DIMS = (((1,), (1,)), ((), ()))


def _make_kernel(*, has_bias, acc_in_out, k_steps, k_rem, tk):
    """Specialized matmul kernel.

    has_bias:   a (1, tn) bias block is the third input ref.
    acc_in_out: accumulate partial sums directly into o_ref (f32 output),
                skipping the VMEM scratch accumulator.
    k_steps:    static K-grid extent.
    k_rem:      K % tk (0 => no ragged K block => no masking emitted).
    """

    def kernel(*refs):
        if has_bias:
            x_ref, w_ref, b_ref, o_ref = refs[0], refs[1], refs[2], refs[3]
            rest = refs[4:]
        else:
            x_ref, w_ref, o_ref = refs[0], refs[1], refs[2]
            rest = refs[3:]
        acc_ref = o_ref if (acc_in_out or k_steps == 1) else rest[0]

        k = pl.program_id(2)
        x = x_ref[...]
        w = w_ref[...]
        if k_rem:
            # In-kernel ragged-K masking: zero out-of-range lanes of BOTH tiles
            # on the last K step (padding is undefined and may be NaN/Inf, so
            # masking only one operand is not enough: 0 * NaN = NaN).
            limit = jnp.where(k == k_steps - 1, k_rem, tk)
            xcol = lax.broadcasted_iota(jnp.int32, x.shape, dimension=1)
            x = jnp.where(xcol < limit, x, jnp.zeros_like(x))
            wcol = lax.broadcasted_iota(jnp.int32, w.shape, dimension=1)
            w = jnp.where(wcol < limit, w, jnp.zeros_like(w))

        part = lax.dot_general(
            x, w, dimension_numbers=_DIMS, preferred_element_type=jnp.float32
        )

        if k_steps == 1:
            # Single K step: no accumulator phases at all.
            if has_bias:
                part = part + b_ref[...].astype(jnp.float32)
            o_ref[...] = part.astype(o_ref.dtype)
            return

        @pl.when(k == 0)
        def _():
            acc_ref[...] = jnp.zeros_like(acc_ref)

        acc_ref[...] += part

        # Finalize: cast/store (scratch path) and/or add bias on the last step.
        if (not acc_in_out) or has_bias:
            @pl.when(k == k_steps - 1)
            def _():
                if acc_in_out:
                    o_ref[...] = o_ref[...] + b_ref[...].astype(o_ref.dtype)
                else:
                    out = acc_ref[...]
                    if has_bias:
                        out = out + b_ref[...].astype(jnp.float32)
                    o_ref[...] = out.astype(o_ref.dtype)

    return kernel


def simple_linear(x, weight, bias=None, *, tm=None, tn=None, tk=None):
    """y = x @ weight.T (+ bias).

    x:      (..., in_features)
    weight: (out_features, in_features)   -- PyTorch nn.Linear layout, no transpose copy
    bias:   (out_features,) or None (skips the bias DMA + add entirely)
    """
    out_features, in_features = weight.shape
    orig_shape = x.shape
    x2d = x.reshape(-1, in_features)  # fold all leading dims into one M axis
    M, K = x2d.shape
    N = out_features
    out_dtype = x.dtype

    itemsize = jnp.dtype(x.dtype).itemsize
    out_itemsize = jnp.dtype(out_dtype).itemsize

    # ---- tile selection --------------------------------------------------------
    # 512x512 output tiles (f32) keep arithmetic intensity above the HBM roofline
    # and amortize per-step overhead while the double-buffered VMEM footprint
    # (~10 MiB f32 / ~10 MiB bf16) fits every generation's default scoped limit.
    if tm is None:
        tm = 512
    if tn is None:
        # Tiny-M (decode-like) shapes are pure weight streaming: widen N instead
        # of shrinking everything to M.
        tn = 1024 if M <= 64 else 512
    if tk is None:
        tk = 2048 if itemsize <= 2 else 1024

    # Last-two block dims must be (8,128)-aligned OR equal the full array dim.
    tm = M if M <= tm else tm            # defaults are multiples of 8
    tn = N if N <= tn else tn            # defaults are multiples of 128
    if K <= tk:
        tk = K                           # single full-K step (full-extent block)
    k_steps = int(pl.cdiv(K, tk))
    k_rem = int(K % tk) if k_steps > 1 else 0   # ragged K handled in-kernel

    has_bias = bias is not None
    acc_in_out = out_dtype == jnp.float32        # accumulate directly into o_ref
    use_acc_scratch = (k_steps > 1) and (not acc_in_out)

    grid = (pl.cdiv(M, tm), pl.cdiv(N, tn), k_steps)

    cost = pl.CostEstimate(
        flops=2 * M * K * N,
        transcendentals=0,
        bytes_accessed=(M * K + K * N + (N if has_bias else 0)) * itemsize
        + M * N * out_itemsize,
    )

    # VMEM budget: inputs/outputs are double-buffered; acc (if any) is f32.
    vmem_est = 2 * (tm * tk + tn * tk) * itemsize + 2 * tm * tn * out_itemsize
    if has_bias:
        vmem_est += 2 * tn * jnp.dtype(bias.dtype).itemsize
    if use_acc_scratch:
        vmem_est += tm * tn * 4

    # v7x splits the grid across 2 TensorCores via the 'parallel' M/N axes.
    cp_kwargs = dict(dimension_semantics=("parallel", "parallel", "arbitrary"))
    if vmem_est > 14 * 1024 * 1024:
        # Only needed for user-supplied oversized tiles; cap well below v7x's
        # 64 MiB/TC VMEM to leave headroom for compiler-internal scratch.
        cp_kwargs["vmem_limit_bytes"] = min(int(vmem_est * 5 // 4), 48 * 1024 * 1024)

    in_specs = [
        pl.BlockSpec((tm, tk), lambda i, j, k: (i, k)),   # x tile
        pl.BlockSpec((tn, tk), lambda i, j, k: (j, k)),   # weight tile (out, in) layout
    ]
    args = [x2d, weight]
    if has_bias:
        in_specs.append(pl.BlockSpec((1, tn), lambda i, j, k: (0, j)))
        args.append(bias.reshape(1, N))

    kernel = _make_kernel(
        has_bias=has_bias, acc_in_out=acc_in_out,
        k_steps=k_steps, k_rem=k_rem, tk=int(tk),
    )

    scratch_shapes = []
    if use_acc_scratch:
        scratch_shapes.append(pltpu.VMEM((tm, tn), jnp.float32))

    out = pl.pallas_call(
        kernel,
        out_shape=jax.ShapeDtypeStruct((M, N), out_dtype),
        grid_spec=pltpu.PrefetchScalarGridSpec(
            num_scalar_prefetch=0,
            grid=grid,
            in_specs=in_specs,
            out_specs=pl.BlockSpec((tm, tn), lambda i, j, k: (i, j)),
            scratch_shapes=scratch_shapes,
        ),
        compiler_params=pltpu.CompilerParams(**cp_kwargs),
        cost_estimate=cost,
    )(*args)

    return out.reshape(*orig_shape[:-1], N)


def init_params(key, in_features, out_features, bias=False, dtype=jnp.float32):
    """Matches torch kaiming_uniform_(a=sqrt(5)) on a (out, in) weight:
    bound = 1/sqrt(fan_in). Bias initialized to zeros (frozen when bias=False)."""
    bound = 1.0 / math.sqrt(in_features)
    weight = jax.random.uniform(
        key, (out_features, in_features), dtype=dtype, minval=-bound, maxval=bound
    )
    b = jnp.zeros((out_features,), dtype=dtype)
    return weight, b


if __name__ == "__main__":
    key = jax.random.PRNGKey(0)
    k_x, k_w, k_x2, k_w2, k_b2, k_x3, k_w3 = jax.random.split(key, 7)

    # --- module-sized example: batch=2, seq=8, in=32, out=48 (bias=False default:
    #     frozen zeros bias, still added exactly like F.linear in the module) ---
    batch, seq, in_features, out_features = 2, 8, 32, 48
    x = jax.random.normal(k_x, (batch, seq, in_features), dtype=jnp.float32)
    weight, bias = init_params(k_w, in_features, out_features, bias=False)

    y = jax.block_until_ready(simple_linear(x, weight, bias))
    y_ref = x @ weight.T + bias
    assert y.shape == (batch, seq, out_features)
    assert jnp.allclose(y, y_ref, atol=1e-5, rtol=1e-5)

    # Fast path: bias=None skips the bias DMA/add entirely.
    y_nb = jax.block_until_ready(simple_linear(x, weight, None))
    assert jnp.allclose(y_nb, x @ weight.T, atol=1e-5, rtol=1e-5)

    # --- f32 config: multi-step K with accumulate-into-output, ragged-K masking
    #     (K % tk != 0 and K % 128 != 0), ragged N blocks, nonzero bias ---
    M2, K2, N2 = 300, 1300, 640
    x2 = jax.random.normal(k_x2, (M2, K2), dtype=jnp.float32)
    w2 = jax.random.uniform(k_w2, (N2, K2), dtype=jnp.float32, minval=-0.05, maxval=0.05)
    b2 = jax.random.normal(k_b2, (N2,), dtype=jnp.float32)
    y2 = jax.block_until_ready(simple_linear(x2, w2, b2))
    y2_ref = jnp.dot(x2, w2.T, precision=lax.Precision.HIGHEST) + b2
    assert y2.shape == (M2, N2)
    assert jnp.allclose(y2, y2_ref, atol=1e-3, rtol=1e-3)

    # --- bf16 config: exercises the VMEM-scratch accumulator path (non-f32 out)
    #     with the larger bf16 K tile and a ragged last K block ---
    M3, K3, N3 = 128, 3072, 256
    x3 = jax.random.normal(k_x3, (M3, K3), dtype=jnp.float32).astype(jnp.bfloat16)
    w3 = jax.random.uniform(
        k_w3, (N3, K3), dtype=jnp.float32, minval=-0.05, maxval=0.05
    ).astype(jnp.bfloat16)
    y3 = jax.block_until_ready(simple_linear(x3, w3, None))
    y3_ref = jnp.dot(x3.astype(jnp.float32), w3.astype(jnp.float32).T)
    assert y3.shape == (M3, N3)
    assert jnp.allclose(y3.astype(jnp.float32), y3_ref, atol=5e-2, rtol=5e-2)

    print("KERNEL_OK")
</pallas_src>

<mosaic_0001>
module attributes {stable_mosaic.version = 11 : i64} {
  func.func @kernel(%arg0: i32, %arg1: i32, %arg2: i32, %arg3: memref<16x32xf32, #tpu.memory_space<vmem>>, %arg4: memref<48x32xf32, #tpu.memory_space<vmem>>, %arg5: memref<1x48xf32, #tpu.memory_space<vmem>>, %arg6: memref<16x48xf32, #tpu.memory_space<vmem>>) attributes {dimension_semantics = [#tpu.dimension_semantics<parallel>, #tpu.dimension_semantics<parallel>, #tpu.dimension_semantics<arbitrary>], iteration_bounds = array<i64: 1, 1, 1>, scalar_prefetch = 0 : i64, scratch_operands = 0 : i64, tpu.core_type = #tpu.core_type<tc>, window_params = [{transform_indices = @transform_0, window_bounds = array<i64: 16, 32>}, {transform_indices = @transform_1, window_bounds = array<i64: 48, 32>}, {transform_indices = @transform_2, window_bounds = array<i64: 1, 48>}, {transform_indices = @transform_3, window_bounds = array<i64: 16, 48>}]} {
    %c0 = arith.constant 0 : index
    %c0_0 = arith.constant 0 : index
    %0 = vector.load %arg3[%c0, %c0_0] : memref<16x32xf32, #tpu.memory_space<vmem>>, vector<16x32xf32>
    %c0_1 = arith.constant 0 : index
    %c0_2 = arith.constant 0 : index
    %1 = vector.load %arg4[%c0_1, %c0_2] : memref<48x32xf32, #tpu.memory_space<vmem>>, vector<48x32xf32>
    %cst = arith.constant dense<0.000000e+00> : vector<16x48xf32>
    %2 = tpu.matmul %0, %1, %cst {dimension_numbers = #tpu.dot_dimension_numbers<[1], [1], [0], [0], [0, 0, 1, 0], [], []>} : vector<16x32xf32>, vector<48x32xf32>, vector<16x48xf32> -> vector<16x48xf32>
    %c0_3 = arith.constant 0 : index
    %c0_4 = arith.constant 0 : index
    %3 = vector.load %arg5[%c0_3, %c0_4] : memref<1x48xf32, #tpu.memory_space<vmem>>, vector<1x48xf32>
    %4 = vector.broadcast %3 : vector<1x48xf32> to vector<16x48xf32>
    %5 = arith.addf %2, %4 : vector<16x48xf32>
    %c0_5 = arith.constant 0 : index
    %c0_6 = arith.constant 0 : index
    %6 = vector.load %arg6[%c0_5, %c0_6] : memref<16x48xf32, #tpu.memory_space<vmem>>, vector<16x48xf32>
    tpu.vector_store %arg6[%c0_5, %c0_6], %5 {strides = array<i32>} : memref<16x48xf32, #tpu.memory_space<vmem>>, vector<16x48xf32>,
    return
  }
  func.func @transform_0(%arg0: i32, %arg1: i32, %arg2: i32) -> (i32, i32) {
    %c0_i32 = arith.constant 0 : i32
    return %arg0, %arg2 : i32, i32
  }
  func.func @transform_1(%arg0: i32, %arg1: i32, %arg2: i32) -> (i32, i32) {
    %c0_i32 = arith.constant 0 : i32
    return %arg1, %arg2 : i32, i32
  }
  func.func @transform_2(%arg0: i32, %arg1: i32, %arg2: i32) -> (i32, i32) {
    %c0_i32 = arith.constant 0 : i32
    %c0_i32_0 = arith.constant 0 : i32
    return %c0_i32, %arg1 : i32, i32
  }
  func.func @transform_3(%arg0: i32, %arg1: i32, %arg2: i32) -> (i32, i32) {
    %c0_i32 = arith.constant 0 : i32
    return %arg0, %arg1 : i32, i32
  }
}

</mosaic_0001>

<llo_original>
// kernel: tpu_custom_call.1
$region0: #{tpu_custom_call.1}
  #allocation0 [shape = 'u32[]', space=smem, size = 0x4, offset = 0x4, fixed_abs, tag = 'smem constant byte address 0x4 - core index']
  #allocation1 [shape = 'u32[144,128]{1,0:T(1,128)}', space=vmem, size = 0x12000, scoped, tag = 'internal scratch']
  %s0 = inlined_call_operand.vmem [shape: f32[16,32], index: 0, kind: input, shape index: {}]
  %s1 = inlined_call_operand.vmem [shape: f32[48,32], index: 1, kind: input, shape index: {}]
  %s2 = inlined_call_operand.vmem [shape: f32[1,48], index: 2, kind: input, shape index: {}]
  %s3 = inlined_call_operand.hbm [shape: f32[16,48], index: 3, kind: output, shape index: {}]
  %s4 = sld [smem:[#allocation0]]
  $region22: #{tpu_custom_call.1} parent=0
    _
  %s6 = ssub.s32 1, %s4
  %s7 = scalar_select 0, %s6, %s4
  $region1: #{tpu_custom_call.1} parent=0
    #allocation2 [shape = 'u8[8192]{0}', space=vmem, size = 0x2000, scoped, tag = 'output window, operand 0, single buffered']
    #allocation3 [shape = 's32[1]{0}', space=sflag, size = 0x4, scoped, tag = 'scoped memory for tpu_custom_call.1']
    %8 = vsyncpa [#allocation3], 0
    // Predicated region
    $region2: #{tpu_custom_call.1} parent=1 // pred_check
      _
    $region3: #{tpu_custom_call.1} parent=1 // pred_check_branch
      %10 = sbr.rel (0) target = $region5
    $region4: #{tpu_custom_call.1} parent=1 // pred_region
      _
    $region5: #{tpu_custom_call.1} parent=1 // pred_fallthru
      _
    // Predicated region
    $region6: #{tpu_custom_call.1} parent=1 // pred_check
      _
    $region7: #{tpu_custom_call.1} parent=1 // pred_check_branch
      %12 = sbr.rel (0) target = $region9
    $region8: #{tpu_custom_call.1} parent=1 // pred_region
      _
    $region9: #{tpu_custom_call.1} parent=1 // pred_fallthru
      _
    // Predicated region
    $region10: #{tpu_custom_call.1} parent=1 // pred_check
      _
    $region11: #{tpu_custom_call.1} parent=1 // pred_check_branch
      %14 = sbr.rel (0) target = $region13
    $region12: #{tpu_custom_call.1} parent=1 // pred_region
      _
    $region13: #{tpu_custom_call.1} parent=1 // pred_fallthru
      _
    %v15 = vld [vmem:[%s0] sm:$0xff]
    %v16 = vld [vmem:[%s0 + $0x8] sm:$0xff]
    %v17 = vld [vmem:[%s1] sm:$0xff]
    %v18 = vld [vmem:[%s1 + $0x8] sm:$0xff]
    %v19 = vld [vmem:[%s1 + $0x10] sm:$0xff]
    %v20 = vld [vmem:[%s1 + $0x18] sm:$0xff]
    %v21 = vld [vmem:[%s1 + $0x20] sm:$0xff]
    %v22 = vld [vmem:[%s1 + $0x28] sm:$0xff]
    %v23 = vld [vmem:[%s2] sm:$0x1]
    %v25 = vlaneseq
    %v26 = vshrl.u32 %v25, 7
    %v27 = vsub.s32 0, %v26
    %v28 = vrot.slane %v23, %v27
    %vm30 = vcmask 261120
    %v32 = vsel %vm30, %v15, 0
    %v35 = vsel %vm30, %v16, 0
    %v38 = vsel %vm30, %v17, 0
    %v41 = vsel %vm30, %v18, 0
    %v44 = vsel %vm30, %v19, 0
    %v47 = vsel %vm30, %v20, 0
    %v50 = vsel %vm30, %v21, 0
    %v53 = vsel %vm30, %v22, 0
    %55 = vmatprep.subr.mxu0 0.0
    %56 = vmatpush1.xpose.msra.mxu0 0.0
    %57 = vmatprep.subr.mxu0 0.0
    %58 = vmatpush1.xpose.msra.mxu0 0.0
    %59 = vmatprep.subr.mxu0 0.0
    %60 = vmatpush1.xpose.msra.mxu0 0.0
    %61 = vmatprep.subr.mxu0 0.0
    %62 = vmatpush1.xpose.msra.mxu0 0.0
    %63 = vmatprep.subr.mxu0 0.0
    %64 = vmatpush1.xpose.msra.mxu0 0.0
    %65 = vmatprep.subr.mxu0 0.0
    %66 = vmatpush1.xpose.msra.mxu0 0.0
    %67 = vmatprep.subr.mxu0 0.0
    %68 = vmatpush1.xpose.msra.mxu0 0.0
    %69 = vmatprep.subr.mxu0 0.0
    %70 = vmatpush1.xpose.msra.mxu0 0.0
    %71 = vmatprep.subr.mxu0 0.0
    %72 = vmatpush1.xpose.msra.mxu0 0.0
    %73 = vmatprep.subr.mxu0 0.0
    %74 = vmatpush1.xpose.msra.mxu0 0.0
    %75 = vmatprep.subr.mxu0 0.0
    %76 = vmatpush1.xpose.msra.mxu0 %v53
    %77 = vmatprep.subr.mxu0 0.0
    %78 = vmatpush1.xpose.msra.mxu0 %v50
    %79 = vmatprep.subr.mxu0 0.0
    %80 = vmatpush1.xpose.msra.mxu0 %v47
    %81 = vmatprep.subr.mxu0 0.0
    %82 = vmatpush1.xpose.msra.mxu0 %v44
    %83 = vmatprep.subr.mxu0 0.0
    %84 = vmatpush1.xpose.msra.mxu0 %v41
    %85 = vmatprep.subr.mxu0 0.0
    %86 = vmatpush1.xpose.msra.mxu0 %v38
    %87 = vmatprep.subr.mxu0 0.0
    %88 = vmatpush2.xpose.msra.mxu0 0.0
    %89 = vmatprep.subr.mxu0 0.0
    %90 = vmatpush2.xpose.msra.mxu0 0.0
    %91 = vmatprep.subr.mxu0 0.0
    %92 = vmatpush2.xpose.msra.mxu0 0.0
    %93 = vmatprep.subr.mxu0 0.0
    %94 = vmatpush2.xpose.msra.mxu0 0.0
    %95 = vmatprep.subr.mxu0 0.0
    %96 = vmatpush2.xpose.msra.mxu0 0.0
    %97 = vmatprep.subr.mxu0 0.0
    %98 = vmatpush2.xpose.msra.mxu0 0.0
    %99 = vmatprep.subr.mxu0 0.0
    %100 = vmatpush2.xpose.msra.mxu0 0.0
    %101 = vmatprep.subr.mxu0 0.0
    %102 = vmatpush2.xpose.msra.mxu0 0.0
    %103 = vmatprep.subr.mxu0 0.0
    %104 = vmatpush2.xpose.msra.mxu0 0.0
    %105 = vmatprep.subr.mxu0 0.0
    %106 = vmatpush2.xpose.msra.mxu0 0.0
    %107 = vmatprep.subr.mxu0 0.0
    %108 = vmatpush2.xpose.msra.mxu0 0.0
    %109 = vmatprep.subr.mxu0 0.0
    %110 = vmatpush2.xpose.msra.mxu0 0.0
    %111 = vmatprep.subr.mxu0 0.0
    %112 = vmatpush2.xpose.msra.mxu0 0.0
    %113 = vmatprep.subr.mxu0 0.0
    %114 = vmatpush2.xpose.msra.mxu0 0.0
    %115 = vmatprep.subr.mxu0 0.0
    %116 = vmatpush2.xpose.msra.mxu0 0.0
    %117 = vmatprep.subr.mxu0 0.0
    %118 = vmatpush2.xpose.msra.mxu0 0.0
    %119 = vmatprep.mubr.f32.mxu0 0.0
    %120 = vmatmul.mubr.f32.gmra.mxu0 %v32
    %v121 = vpop.f32.mrf.mxu0
    %v122 = vadd.f32 %v28, %v121
    %v123 = vpop.f32.mrf.mxu0
    %124 = vmatprep.mubr.f32.mxu0 0.0
    %125 = vmatmul.mubr.f32.gmra.mxu0 %v35
    %v126 = vpop.f32.mrf.mxu0
    %v127 = vadd.f32 %v28, %v126
    %v128 = vpop.f32.mrf.mxu0
    %129 = vdwg.mxu0
    %vm130 = vcmask 392192
    %131 = vst.msk [vmem:[#allocation2] sm:$0xff] %vm130, %v122
    %132 = vst.msk [vmem:[#allocation2 + $0x8] sm:$0xff] %vm130, %v127
    // Predicated region
    $region14: #{tpu_custom_call.1} parent=1 // pred_check
      _
    $region15: #{tpu_custom_call.1} parent=1 // pred_check_branch
      %134 = sbr.rel (0) target = $region17
    $region16: #{tpu_custom_call.1} parent=1 // pred_region
      %s136 = ssub.s32 256, 256
      %137 = vsyncadd [#allocation3], %s136
      %s138 = sshll.u32 [#allocation2], 4
      %s139 = int_to_ptr.vmem [resolvable:$true] %s138
      %144 = dma.vmem_to_hbm [thread:$0]  %s139, 256, %s3, [#allocation3], 128, 128, 8
    $region17: #{tpu_custom_call.1} parent=1 // pred_fallthru
      _
    // Predicated region
    $region18: #{tpu_custom_call.1} parent=1 // pred_check
      _
    $region19: #{tpu_custom_call.1} parent=1 // pred_check_branch
      %146 = sbr.rel (0) target = $region21
    $region20: #{tpu_custom_call.1} parent=1 // pred_region
      %147 = dma.done [#allocation3], 256
    $region21: #{tpu_custom_call.1} parent=1 // pred_fallthru
      _
    %148 = vsyncpa [#allocation3], 1

</llo_original>
